<compile_context>
chip_gen: v7x
topology: tpu7x:2x2x1
jax: 0.10.0
libtpu: 0.0.40
codegen_flags: <defaults>
</compile_context>

<pallas_src>
import jax
import jax.numpy as jnp
from jax.experimental import pallas as pl
from jax.experimental.pallas import tpu as pltpu

_LANES = 1024          # lane-dense width: multiple of 128 (full vregs, unmasked stores)
_MAX_BLOCK_ROWS = 512  # (512, 1024) f32 = 2 MiB per block; 2 arrays x 2 bufs = 8 MiB VMEM


def _cdiv(a, b):
    return (a + b - 1) // b


def _round_up(a, b):
    return _cdiv(a, b) * b


def _mlp_kernel(params_ref, x_ref, o_ref):
    # params_ref (SMEM, f32[7]): [w1_0, w1_1, b1_0, b1_1, a0, a1, c]
    #   a_i = W2[0,i] * W3[0,0],  c = b2[0] * W3[0,0] + b3[0]  (Linear2/Linear3 folded)
    x = x_ref[...]  # (block_rows, _LANES) f32, lane-dense tile

    # Read the 7 scalars once (cheap SMEM loads + scalar->vreg broadcasts).
    w1_0 = params_ref[0]
    w1_1 = params_ref[1]
    b1_0 = params_ref[2]
    b1_1 = params_ref[3]
    a0 = params_ref[4]
    a1 = params_ref[5]
    c = params_ref[6]

    # Linear(1, 2) + ReLU (two hidden "channels", elementwise on the VPU)
    h0 = jnp.maximum(x * w1_0 + b1_0, 0.0)
    h1 = jnp.maximum(x * w1_1 + b1_1, 0.0)

    # Folded Linear(2, 1) -> Linear(1, 1)
    o_ref[...] = h0 * a0 + h1 * a1 + c


def fold_params(weights):
    """Pack the PyTorch-shaped weights into the folded f32[7] parameter vector."""
    w1, b1, w2, b2, w3, b3 = weights
    w3s = w3[0, 0]
    return jnp.stack(
        [
            w1[0, 0], w1[1, 0], b1[0], b1[1],
            w2[0, 0] * w3s, w2[0, 1] * w3s, b2[0] * w3s + b3[0],
        ]
    ).astype(jnp.float32)


def complex_module_forward(x, packed_params):
    """x: f32[..., 1]; packed_params: f32[7].  Returns f32[..., 1]."""
    orig_shape = x.shape
    assert orig_shape[-1] == 1, "ComplexModule expects last dim == 1"

    # Flatten every element into one stream (feature dim is 1, all elems independent),
    # then lay it out lane-dense as (rows, 1024).
    flat = x.reshape(-1).astype(jnp.float32)
    n = flat.shape[0]

    rows = max(_cdiv(n, _LANES), 1)
    block_rows = min(_MAX_BLOCK_ROWS, _round_up(rows, 8))   # sublane-aligned block
    rows_padded = _round_up(rows, block_rows)               # whole number of blocks
    n_pad = rows_padded * _LANES

    if n_pad != n:
        flat = jnp.pad(flat, (0, n_pad - n))
    slab = flat.reshape(rows_padded, _LANES)

    grid = (rows_padded // block_rows,)

    out = pl.pallas_call(
        _mlp_kernel,
        out_shape=jax.ShapeDtypeStruct((rows_padded, _LANES), jnp.float32),
        grid=grid,
        in_specs=[
            pl.BlockSpec(memory_space=pltpu.MemorySpace.SMEM),        # params (f32[7])
            pl.BlockSpec((block_rows, _LANES), lambda i: (i, 0)),     # x tile
        ],
        out_specs=pl.BlockSpec((block_rows, _LANES), lambda i: (i, 0)),
        compiler_params=pltpu.CompilerParams(
            dimension_semantics=("parallel",),   # shard rows across TCs on v7x
        ),
        cost_estimate=pl.CostEstimate(
            flops=10 * n_pad, transcendentals=0, bytes_accessed=8 * n_pad
        ),
    )(packed_params, slab)

    # Slice off padded rows (padding zeros do NOT produce zero outputs: ReLU + bias).
    return out.reshape(-1)[:n].reshape(orig_shape)


def init_params():
    """Deterministic parameter init matching the PyTorch layer shapes.

    linear:     W1 (2,1), b1 (2,)
    linear2[0]: W2 (1,2), b2 (1,)
    linear2[1]: W3 (1,1), b3 (1,)
    """
    key = jax.random.PRNGKey(42)
    k1, k2, k3, k4, k5, k6 = jax.random.split(key, 6)
    w1 = jax.random.uniform(k1, (2, 1), jnp.float32, -1.0, 1.0)
    b1 = jax.random.uniform(k2, (2,), jnp.float32, -1.0, 1.0)
    w2 = jax.random.uniform(k3, (1, 2), jnp.float32, -1.0, 1.0) / jnp.sqrt(2.0)
    b2 = jax.random.uniform(k4, (1,), jnp.float32, -1.0, 1.0)
    w3 = jax.random.uniform(k5, (1, 1), jnp.float32, -1.0, 1.0)
    b3 = jax.random.uniform(k6, (1,), jnp.float32, -1.0, 1.0)
    return (w1, b1, w2, b2, w3, b3)


def reference_forward(x, weights):
    """Plain-JAX reference of the PyTorch forward (for correctness check)."""
    w1, b1, w2, b2, w3, b3 = weights
    h = jnp.maximum(x @ w1.T + b1, 0.0)   # Linear(1,2) + ReLU
    y = h @ w2.T + b2                     # Linear(2,1)
    return y @ w3.T + b3                  # Linear(1,1)


if __name__ == "__main__":
    weights = init_params()
    packed = fold_params(weights)

    # Small input consistent with the module: batch=2, seq=8, in_features=1.
    key = jax.random.PRNGKey(0)
    x = jax.random.normal(key, (2, 8, 1), dtype=jnp.float32)

    out = complex_module_forward(x, packed)
    out = jax.block_until_ready(out)

    ref = reference_forward(x, weights)
    assert out.shape == x.shape, (out.shape, x.shape)
    assert jnp.allclose(out, ref, atol=1e-5, rtol=1e-5), "mismatch vs reference"

    print("KERNEL_OK")
</pallas_src>

<mosaic_0001>
module attributes {stable_mosaic.version = 11 : i64} {
  func.func @_mlp_kernel(%arg0: i32, %arg1: memref<7xf32, #tpu.memory_space<smem>>, %arg2: memref<8x1024xf32, #tpu.memory_space<vmem>>, %arg3: memref<8x1024xf32, #tpu.memory_space<vmem>>) attributes {dimension_semantics = [#tpu.dimension_semantics<parallel>], iteration_bounds = array<i64: 1>, scalar_prefetch = 0 : i64, scratch_operands = 0 : i64, tpu.core_type = #tpu.core_type<tc>, window_params = [{transform_indices = @transform_0, window_bounds = array<i64: 7>}, {transform_indices = @transform_1, window_bounds = array<i64: 8, 1024>}, {transform_indices = @transform_2, window_bounds = array<i64: 8, 1024>}]} {
    %c0 = arith.constant 0 : index
    %c0_0 = arith.constant 0 : index
    %0 = vector.load %arg2[%c0, %c0_0] : memref<8x1024xf32, #tpu.memory_space<vmem>>, vector<8x1024xf32>
    %c0_1 = arith.constant 0 : index
    %1 = memref.load %arg1[%c0_1] : memref<7xf32, #tpu.memory_space<smem>>
    %c1 = arith.constant 1 : index
    %2 = memref.load %arg1[%c1] : memref<7xf32, #tpu.memory_space<smem>>
    %c2 = arith.constant 2 : index
    %3 = memref.load %arg1[%c2] : memref<7xf32, #tpu.memory_space<smem>>
    %c3 = arith.constant 3 : index
    %4 = memref.load %arg1[%c3] : memref<7xf32, #tpu.memory_space<smem>>
    %c4 = arith.constant 4 : index
    %5 = memref.load %arg1[%c4] : memref<7xf32, #tpu.memory_space<smem>>
    %c5 = arith.constant 5 : index
    %6 = memref.load %arg1[%c5] : memref<7xf32, #tpu.memory_space<smem>>
    %c6 = arith.constant 6 : index
    %7 = memref.load %arg1[%c6] : memref<7xf32, #tpu.memory_space<smem>>
    %8 = vector.broadcast %1 : f32 to vector<8x1024xf32>
    %9 = arith.mulf %0, %8 : vector<8x1024xf32>
    %10 = vector.broadcast %3 : f32 to vector<8x1024xf32>
    %11 = arith.addf %9, %10 : vector<8x1024xf32>
    %cst = arith.constant 0.000000e+00 : f32
    %12 = vector.broadcast %cst : f32 to vector<8x1024xf32>
    %13 = arith.maximumf %11, %12 : vector<8x1024xf32>
    %14 = vector.broadcast %2 : f32 to vector<8x1024xf32>
    %15 = arith.mulf %0, %14 : vector<8x1024xf32>
    %16 = vector.broadcast %4 : f32 to vector<8x1024xf32>
    %17 = arith.addf %15, %16 : vector<8x1024xf32>
    %cst_2 = arith.constant 0.000000e+00 : f32
    %18 = vector.broadcast %cst_2 : f32 to vector<8x1024xf32>
    %19 = arith.maximumf %17, %18 : vector<8x1024xf32>
    %20 = vector.broadcast %5 : f32 to vector<8x1024xf32>
    %21 = arith.mulf %13, %20 : vector<8x1024xf32>
    %22 = vector.broadcast %6 : f32 to vector<8x1024xf32>
    %23 = arith.mulf %19, %22 : vector<8x1024xf32>
    %24 = arith.addf %21, %23 : vector<8x1024xf32>
    %25 = vector.broadcast %7 : f32 to vector<8x1024xf32>
    %26 = arith.addf %24, %25 : vector<8x1024xf32>
    %c0_3 = arith.constant 0 : index
    %c0_4 = arith.constant 0 : index
    %27 = vector.load %arg3[%c0_3, %c0_4] : memref<8x1024xf32, #tpu.memory_space<vmem>>, vector<8x1024xf32>
    tpu.vector_store %arg3[%c0_3, %c0_4], %26 {strides = array<i32>} : memref<8x1024xf32, #tpu.memory_space<vmem>>, vector<8x1024xf32>,
    return
  }
  func.func @transform_0(%arg0: i32) -> i32 {
    %c0_i32 = arith.constant 0 : i32
    %c0_i32_0 = arith.constant 0 : i32
    return %c0_i32 : i32
  }
  func.func @transform_1(%arg0: i32) -> (i32, i32) {
    %c0_i32 = arith.constant 0 : i32
    %c0_i32_0 = arith.constant 0 : i32
    return %arg0, %c0_i32 : i32, i32
  }
  func.func @transform_2(%arg0: i32) -> (i32, i32) {
    %c0_i32 = arith.constant 0 : i32
    %c0_i32_0 = arith.constant 0 : i32
    return %arg0, %c0_i32 : i32, i32
  }
}

</mosaic_0001>

<llo_original>
// kernel: tpu_custom_call.1
$region0: #{tpu_custom_call.1}
  #allocation0 [shape = 'u32[]', space=smem, size = 0x4, offset = 0x4, fixed_abs, tag = 'smem constant byte address 0x4 - core index']
  #allocation1 [shape = 'u32[144,128]{1,0:T(1,128)}', space=vmem, size = 0x12000, scoped, tag = 'internal scratch']
  %s0 = inlined_call_operand.hbm [shape: f32[7], index: 0, kind: input, shape index: {}]
  %s1 = inlined_call_operand.hbm [shape: f32[8,1024], index: 1, kind: input, shape index: {}]
  %s2 = inlined_call_operand.hbm [shape: f32[8,1024], index: 2, kind: output, shape index: {}]
  %s3 = sld [smem:[#allocation0]]
  $region26: #{tpu_custom_call.1} parent=0
    _
  %s5 = ssub.s32 1, %s3
  %s6 = scalar_select 0, %s5, %s3
  $region1: #{tpu_custom_call.1} parent=0
    #allocation2 [shape = 'u8[512]{0}', space=smem, size = 0x200, scoped, tag = 'input window, operand 0, single buffered']
    #allocation3 [shape = 's32[1]{0}', space=sflag, size = 0x4, scoped, tag = 'scoped memory for tpu_custom_call.1']
    #allocation4 [shape = 's32[1]{0}', space=sflag, size = 0x4, scoped, tag = 'scoped memory for tpu_custom_call.1']
    #allocation5 [shape = 's32[1]{0}', space=sflag, size = 0x4, scoped, tag = 'scoped memory for tpu_custom_call.1']
    #allocation6 [shape = 'u8[32768]{0}', space=vmem, size = 0x8000, scoped, tag = 'input window, operand 1, single buffered']
    #allocation7 [shape = 'u8[32768]{0}', space=vmem, size = 0x8000, scoped, tag = 'output window, operand 0, single buffered']
    %7 = vsyncpa [#allocation5], 0
    %8 = vsyncpa [#allocation3], 0
    %9 = vsyncpa [#allocation4], 0
    // Predicated region
    $region2: #{tpu_custom_call.1} parent=1 // pred_check
      _
    $region3: #{tpu_custom_call.1} parent=1 // pred_check_branch
      %11 = sbr.rel (0) target = $region5
    $region4: #{tpu_custom_call.1} parent=1 // pred_region
      %s13 = ssub.s32 16, 16
      %14 = vsyncadd [#allocation5], %s13
      %17 = dma.hbm_to_smem %s0, 16, [#allocation2], [#allocation5]
    $region5: #{tpu_custom_call.1} parent=1 // pred_fallthru
      _
    // Predicated region
    $region6: #{tpu_custom_call.1} parent=1 // pred_check
      _
    $region7: #{tpu_custom_call.1} parent=1 // pred_check_branch
      %19 = sbr.rel (0) target = $region9
    $region8: #{tpu_custom_call.1} parent=1 // pred_region
      %s21 = ssub.s32 1024, 1024
      %22 = vsyncadd [#allocation3], %s21
      %s24 = sshll.u32 [#allocation6], 4
      %s25 = int_to_ptr.vmem [resolvable:$true] %s24
      %27 = dma.hbm_to_vmem [thread:$0]  %s1, 1024, %s25, [#allocation3]
    $region9: #{tpu_custom_call.1} parent=1 // pred_fallthru
      _
    // Predicated region
    $region10: #{tpu_custom_call.1} parent=1 // pred_check
      _
    $region11: #{tpu_custom_call.1} parent=1 // pred_check_branch
      %29 = sbr.rel (0) target = $region13
    $region12: #{tpu_custom_call.1} parent=1 // pred_region
      %30 = dma.done [#allocation5], 16
    $region13: #{tpu_custom_call.1} parent=1 // pred_fallthru
      _
    // Predicated region
    $region14: #{tpu_custom_call.1} parent=1 // pred_check
      _
    $region15: #{tpu_custom_call.1} parent=1 // pred_check_branch
      %32 = sbr.rel (0) target = $region17
    $region16: #{tpu_custom_call.1} parent=1 // pred_region
      %33 = dma.done [#allocation3], 1024
    $region17: #{tpu_custom_call.1} parent=1 // pred_fallthru
      _
    %34 = sfence
    %v35 = vld [vmem:[#allocation6] sm:$0xff]
    %v36 = vld [vmem:[#allocation6 + $0x8] sm:$0xff]
    %v37 = vld [vmem:[#allocation6 + $0x10] sm:$0xff]
    %v38 = vld [vmem:[#allocation6 + $0x18] sm:$0xff]
    %v39 = vld [vmem:[#allocation6 + $0x20] sm:$0xff]
    %v40 = vld [vmem:[#allocation6 + $0x28] sm:$0xff]
    %v41 = vld [vmem:[#allocation6 + $0x30] sm:$0xff]
    %v42 = vld [vmem:[#allocation6 + $0x38] sm:$0xff]
    %s43 = sld [smem:[#allocation2]]
    %s44 = sld [smem:[#allocation2 + $0x1]]
    %s45 = sld [smem:[#allocation2 + $0x2]]
    %s46 = sld [smem:[#allocation2 + $0x3]]
    %s47 = sld [smem:[#allocation2 + $0x4]]
    %s48 = sld [smem:[#allocation2 + $0x5]]
    %s49 = sld [smem:[#allocation2 + $0x6]]
    %v50 = vstv %s43
    %v51 = vmul.f32 %v35, %v50
    %v52 = vmul.f32 %v36, %v50
    %v53 = vmul.f32 %v37, %v50
    %v54 = vmul.f32 %v38, %v50
    %v55 = vmul.f32 %v39, %v50
    %v56 = vmul.f32 %v40, %v50
    %v57 = vmul.f32 %v41, %v50
    %v58 = vmul.f32 %v42, %v50
    %v59 = vstv %s45
    %v60 = vadd.f32 %v51, %v59
    %v61 = vadd.f32 %v52, %v59
    %v62 = vadd.f32 %v53, %v59
    %v63 = vadd.f32 %v54, %v59
    %v64 = vadd.f32 %v55, %v59
    %v65 = vadd.f32 %v56, %v59
    %v66 = vadd.f32 %v57, %v59
    %v67 = vadd.f32 %v58, %v59
    %v68 = vmax.f32 %v60, 0.0
    %v69 = vmax.f32 %v61, 0.0
    %v70 = vmax.f32 %v62, 0.0
    %v71 = vmax.f32 %v63, 0.0
    %v72 = vmax.f32 %v64, 0.0
    %v73 = vmax.f32 %v65, 0.0
    %v74 = vmax.f32 %v66, 0.0
    %v75 = vmax.f32 %v67, 0.0
    %v76 = vstv %s44
    %v77 = vmul.f32 %v35, %v76
    %v78 = vmul.f32 %v36, %v76
    %v79 = vmul.f32 %v37, %v76
    %v80 = vmul.f32 %v38, %v76
    %v81 = vmul.f32 %v39, %v76
    %v82 = vmul.f32 %v40, %v76
    %v83 = vmul.f32 %v41, %v76
    %v84 = vmul.f32 %v42, %v76
    %v85 = vstv %s46
    %v86 = vadd.f32 %v77, %v85
    %v87 = vadd.f32 %v78, %v85
    %v88 = vadd.f32 %v79, %v85
    %v89 = vadd.f32 %v80, %v85
    %v90 = vadd.f32 %v81, %v85
    %v91 = vadd.f32 %v82, %v85
    %v92 = vadd.f32 %v83, %v85
    %v93 = vadd.f32 %v84, %v85
    %v94 = vmax.f32 %v86, 0.0
    %v95 = vmax.f32 %v87, 0.0
    %v96 = vmax.f32 %v88, 0.0
    %v97 = vmax.f32 %v89, 0.0
    %v98 = vmax.f32 %v90, 0.0
    %v99 = vmax.f32 %v91, 0.0
    %v100 = vmax.f32 %v92, 0.0
    %v101 = vmax.f32 %v93, 0.0
    %v102 = vstv %s47
    %v103 = vmul.f32 %v68, %v102
    %v104 = vmul.f32 %v69, %v102
    %v105 = vmul.f32 %v70, %v102
    %v106 = vmul.f32 %v71, %v102
    %v107 = vmul.f32 %v72, %v102
    %v108 = vmul.f32 %v73, %v102
    %v109 = vmul.f32 %v74, %v102
    %v110 = vmul.f32 %v75, %v102
    %v111 = vstv %s48
    %v112 = vmul.f32 %v94, %v111
    %v113 = vmul.f32 %v95, %v111
    %v114 = vmul.f32 %v96, %v111
    %v115 = vmul.f32 %v97, %v111
    %v116 = vmul.f32 %v98, %v111
    %v117 = vmul.f32 %v99, %v111
    %v118 = vmul.f32 %v100, %v111
    %v119 = vmul.f32 %v101, %v111
    %v120 = vadd.f32 %v103, %v112
    %v121 = vadd.f32 %v104, %v113
    %v122 = vadd.f32 %v105, %v114
    %v123 = vadd.f32 %v106, %v115
    %v124 = vadd.f32 %v107, %v116
    %v125 = vadd.f32 %v108, %v117
    %v126 = vadd.f32 %v109, %v118
    %v127 = vadd.f32 %v110, %v119
    %v128 = vstv %s49
    %v129 = vadd.f32 %v120, %v128
    %v130 = vadd.f32 %v121, %v128
    %v131 = vadd.f32 %v122, %v128
    %v132 = vadd.f32 %v123, %v128
    %v133 = vadd.f32 %v124, %v128
    %v134 = vadd.f32 %v125, %v128
    %v135 = vadd.f32 %v126, %v128
    %v136 = vadd.f32 %v127, %v128
    %137 = vst [vmem:[#allocation7] sm:$0xff] %v129
    %138 = vst [vmem:[#allocation7 + $0x8] sm:$0xff] %v130
    %139 = vst [vmem:[#allocation7 + $0x10] sm:$0xff] %v131
    %140 = vst [vmem:[#allocation7 + $0x18] sm:$0xff] %v132
    %141 = vst [vmem:[#allocation7 + $0x20] sm:$0xff] %v133
    %142 = vst [vmem:[#allocation7 + $0x28] sm:$0xff] %v134
    %143 = vst [vmem:[#allocation7 + $0x30] sm:$0xff] %v135
    %144 = vst [vmem:[#allocation7 + $0x38] sm:$0xff] %v136
    // Predicated region
    $region18: #{tpu_custom_call.1} parent=1 // pred_check
      _
    $region19: #{tpu_custom_call.1} parent=1 // pred_check_branch
      %146 = sbr.rel (0) target = $region21
    $region20: #{tpu_custom_call.1} parent=1 // pred_region
      %s148 = ssub.s32 1024, 1024
      %149 = vsyncadd [#allocation4], %s148
      %s151 = sshll.u32 [#allocation7], 4
      %s152 = int_to_ptr.vmem [resolvable:$true] %s151
      %154 = dma.vmem_to_hbm [thread:$0]  %s152, 1024, %s2, [#allocation4]
    $region21: #{tpu_custom_call.1} parent=1 // pred_fallthru
      _
    // Predicated region
    $region22: #{tpu_custom_call.1} parent=1 // pred_check
      _
    $region23: #{tpu_custom_call.1} parent=1 // pred_check_branch
      %156 = sbr.rel (0) target = $region25
    $region24: #{tpu_custom_call.1} parent=1 // pred_region
      %157 = dma.done [#allocation4], 1024
    $region25: #{tpu_custom_call.1} parent=1 // pred_fallthru
      _
    %158 = vsyncpa [#allocation3], 1
    %159 = vsyncpa [#allocation4], 1
    %160 = vsyncpa [#allocation5], 1

</llo_original>
